<compile_context>
chip_gen: v6e
topology: v6e:2x2x1
jax: 0.10.0
libtpu: 0.0.40
codegen_flags: <defaults>
</compile_context>

<pallas_src>
from dataclasses import dataclass
from typing import List, Optional, Tuple

import jax
import jax.numpy as jnp
from jax.experimental import pallas as pl
from jax.experimental.pallas import tpu as pltpu


# -----------------------------------------------------------------------------
# Deterministic "IMAGE_NORMALIZATION_DICT" (synthetic fixed constants; the
# uniception dict is external to the reference module).
# -----------------------------------------------------------------------------
@dataclass(frozen=True)
class _ImgNorm:
    mean: Tuple[float, float, float]
    std: Tuple[float, float, float]


IMAGE_NORMALIZATION_DICT = {
    "imagenet": _ImgNorm(mean=(0.485, 0.456, 0.406), std=(0.229, 0.224, 0.225)),
    "identity": _ImgNorm(mean=(0.0, 0.0, 0.0), std=(1.0, 1.0, 1.0)),
    "half": _ImgNorm(mean=(0.5, 0.5, 0.5), std=(0.5, 0.5, 0.5)),
}


# -----------------------------------------------------------------------------
# Output dataclasses (mirroring the PyTorch interface, with jnp arrays).
# -----------------------------------------------------------------------------
@dataclass
class UFMFlowFieldOutput:
    flow_output: jnp.ndarray
    flow_covariance: Optional[jnp.ndarray] = None
    flow_covariance_inv: Optional[jnp.ndarray] = None
    flow_covariance_log_det: Optional[jnp.ndarray] = None


@dataclass
class UFMMaskFieldOutput:
    mask: jnp.ndarray
    logits: Optional[jnp.ndarray] = None


@dataclass
class UFMOutputInterface:
    flow: Optional[UFMFlowFieldOutput] = None
    classification_refinement: Optional[object] = None
    covisibility: Optional[UFMMaskFieldOutput] = None


# -----------------------------------------------------------------------------
# Pallas kernels
# -----------------------------------------------------------------------------
_LANE = 128
_MAX_TILE_ROWS = 1024          # ~4-6 MiB real HBM traffic / grid step
_FALLBACK_TILE = 512 * _LANE   # lane-dense fallback chunk (HW % 128 != 0)


def _round_up(x: int, m: int) -> int:
    return ((x + m - 1) // m) * m


def _make_dense_kernel(n_imgs: int, scale, offset, out_dtype):
    """Kernel over refs of shape (C, tile_rows, 128). scale/offset are baked
    compile-time Python floats (per-channel scalar immediates)."""
    scale = tuple(float(s) for s in scale)
    offset = tuple(float(o) for o in offset)
    n_ch = len(scale)

    def kernel(*refs):
        in_refs, out_refs = refs[:n_imgs], refs[n_imgs:]
        for i in range(n_imgs):
            for c in range(n_ch):
                out_refs[i][c] = (
                    in_refs[i][c].astype(jnp.float32) * scale[c] + offset[c]
                ).astype(out_dtype)

    return kernel


def _make_fallback_kernel(n_imgs: int):
    """Kernel over refs of shape (C, tile); scale/offset ride as (C, 1) VMEM
    operands broadcast along lanes (ragged-H*W fallback path)."""

    def kernel(scale_ref, offset_ref, *refs):
        s = scale_ref[...]      # (C, 1) float32
        o = offset_ref[...]     # (C, 1) float32
        in_refs, out_refs = refs[:n_imgs], refs[n_imgs:]
        for i in range(n_imgs):
            out_refs[i][...] = (
                in_refs[i][...].astype(jnp.float32) * s + o
            ).astype(out_refs[i].dtype)

    return kernel


def _choose_tile_rows(rows: int, batch: int) -> int:
    """Pick the sublane tile so per-step payload is large (~MiBs) while keeping
    B * n_tiles >= 2 so v7x's two TensorCores both get work."""
    if rows <= 8:
        return rows                      # full extent, single tile
    n = pl.cdiv(rows, _MAX_TILE_ROWS)
    if batch * n < 2:
        n = 2
    tile = _round_up(pl.cdiv(rows, n), 8)  # sublane-aligned
    return min(tile, rows)


def _normalize_images(images: List[jnp.ndarray], scale, offset,
                      out_dtype=jnp.float32) -> List[jnp.ndarray]:
    """Fused per-channel affine normalization of one or more same-shaped images.

    images: list of (B, C, H, W) uint8 or float32 arrays (same shape & dtype).
    scale/offset: length-C tuples of Python floats.
    Returns a list of normalized arrays of shape (B, C, H, W) and dtype out_dtype.
    """
    n = len(images)
    base = images[0]
    for im in images:
        assert im.shape == base.shape and im.dtype == base.dtype
    B, C, H, W = base.shape
    assert len(scale) == C and len(offset) == C
    HW = H * W
    out_dtype = jnp.dtype(out_dtype)
    alias_ok = jnp.dtype(base.dtype) == out_dtype   # in-place rewrite (float path)

    cparams = pltpu.CompilerParams(
        dimension_semantics=("parallel", "parallel"),
        vmem_limit_bytes=32 * 1024 * 1024,
    )

    if HW % _LANE == 0:
        # ------- fast sublane-dense path: (B, C, rows, 128) ------------------
        rows = HW // _LANE
        tile_rows = _choose_tile_rows(rows, B)
        n_tiles = pl.cdiv(rows, tile_rows)

        views = [im.reshape(B, C, rows, _LANE) for im in images]   # free reshape
        blk = pl.BlockSpec((pl.Squeezed(), C, tile_rows, _LANE),
                           lambda b, t: (b, 0, t, 0))

        outs = pl.pallas_call(
            _make_dense_kernel(n, scale, offset, out_dtype),
            out_shape=tuple(
                jax.ShapeDtypeStruct((B, C, rows, _LANE), out_dtype) for _ in range(n)
            ),
            grid_spec=pl.GridSpec(
                grid=(B, n_tiles),
                in_specs=[blk] * n,
                out_specs=[blk] * n,
            ),
            compiler_params=cparams,
            input_output_aliases=({i: i for i in range(n)} if alias_ok else {}),
        )(*views)
        outs = outs if isinstance(outs, (tuple, list)) else (outs,)
        return [o.reshape(B, C, H, W) for o in outs]

    # ------- fallback path: H*W not a multiple of 128 -------------------------
    # Full-extent block for small HW (no edge masking needed); otherwise
    # 128-multiple chunks strictly smaller than the axis (standard edge mask).
    tile = HW if HW <= _FALLBACK_TILE else _FALLBACK_TILE
    n_tiles = pl.cdiv(HW, tile)

    views = [im.reshape(B, C, HW) for im in images]
    scale2 = jnp.asarray(scale, jnp.float32).reshape(C, 1)
    offset2 = jnp.asarray(offset, jnp.float32).reshape(C, 1)

    img_blk = pl.BlockSpec((pl.Squeezed(), C, tile), lambda b, t: (b, 0, t))
    par_blk = pl.BlockSpec((C, 1), lambda b, t: (0, 0))

    outs = pl.pallas_call(
        _make_fallback_kernel(n),
        out_shape=tuple(
            jax.ShapeDtypeStruct((B, C, HW), out_dtype) for _ in range(n)
        ),
        grid_spec=pl.GridSpec(
            grid=(B, n_tiles),
            in_specs=[par_blk, par_blk] + [img_blk] * n,
            out_specs=[img_blk] * n,
        ),
        compiler_params=cparams,
        input_output_aliases=({i + 2: i for i in range(n)} if alias_ok else {}),
    )(scale2, offset2, *views)
    outs = outs if isinstance(outs, (tuple, list)) else (outs,)
    return [o.reshape(B, C, H, W) for o in outs]


# -----------------------------------------------------------------------------
# Model base class (JAX version).
# -----------------------------------------------------------------------------
class UniFlowMatchModelsBaseJAX:
    def __init__(self, inference_resolution=None, encoder_data_norm_type="imagenet",
                 normalized_image_dtype=jnp.float32):
        if inference_resolution is None:
            inference_resolution = [(560, 420)]
        if isinstance(inference_resolution[0], int):
            inference_resolution = [inference_resolution]
        self.inference_resolution = inference_resolution
        # TODO(synk): self.encoder / AutomaticShapeSelection / ResizeToFixedManipulation
        # are undefined external classes in the reference; only the encoder's
        # data_norm_type is kept here.
        self.encoder_data_norm_type = encoder_data_norm_type
        # Set to jnp.bfloat16 if the downstream encoder runs in bf16: halves the
        # dominant HBM write traffic of the normalization kernel.
        self.normalized_image_dtype = normalized_image_dtype

    # --- forward is abstract in the reference module --------------------------
    def forward(self, view1, view2) -> UFMOutputInterface:
        raise NotImplementedError("Implement this method in derived classes")

    def get_parameter_groups(self):
        raise NotImplementedError("Implement this method in derived classes")

    # --- normalization preprocessing (the implemented hot path) ---------------
    def predict_correspondences_batched(
        self,
        source_image: jnp.ndarray,
        target_image: jnp.ndarray,
        data_norm_type: Optional[str] = None,
    ):
        assert source_image.ndim in (3, 4), "source_image must have 3 or 4 dims"
        assert target_image.ndim in (3, 4), "target_image must have 3 or 4 dims"
        assert source_image.dtype == target_image.dtype, \
            "source_image and target_image must share a dtype"
        batched = source_image.ndim == 4
        if not batched:
            source_image = source_image[None]
            target_image = target_image[None]

        if source_image.shape[1] == 3 and target_image.shape[1] == 3:
            pass  # already BCHW
        elif source_image.shape[-1] == 3 and target_image.shape[-1] == 3:
            # TODO(synk): standalone BHWC->BCHW relayout costs an extra HBM round
            # trip; keep inputs BCHW upstream where possible.
            source_image = jnp.transpose(source_image, (0, 3, 1, 2))
            target_image = jnp.transpose(target_image, (0, 3, 1, 2))
        else:
            raise ValueError("images must have 3 channels (BCHW or BHWC)")

        required = IMAGE_NORMALIZATION_DICT[self.encoder_data_norm_type]
        req_mean, req_std = required.mean, required.std
        out_dt = self.normalized_image_dtype

        def _run(scale, offset):
            if source_image.shape == target_image.shape:
                return _normalize_images([source_image, target_image],
                                         scale, offset, out_dt)
            s = _normalize_images([source_image], scale, offset, out_dt)[0]
            t = _normalize_images([target_image], scale, offset, out_dt)[0]
            return s, t

        if source_image.dtype == jnp.float32:
            assert data_norm_type is not None, "data_norm_type required for float32 images"
            assert data_norm_type in IMAGE_NORMALIZATION_DICT
            if data_norm_type != self.encoder_data_norm_type:
                prev = IMAGE_NORMALIZATION_DICT[data_norm_type]
                # x * (prev_std/std) + (prev_mean - mean)/std  — compile-time constants.
                scale = tuple(ps / s for ps, s in zip(prev.std, req_std))
                offset = tuple((pm - m) / s for pm, m, s in zip(prev.mean, req_mean, req_std))
                source_image, target_image = _run(scale, offset)
        elif source_image.dtype == jnp.uint8:
            # (u8/255 - mean)/std == u8 * (1/(255*std)) + (-mean/std)
            # uint8 -> float32 cast is fused inside the Pallas kernel.
            scale = tuple(1.0 / (255.0 * s) for s in req_std)
            offset = tuple(-m / s for m, s in zip(req_mean, req_std))
            source_image, target_image = _run(scale, offset)
        else:
            raise ValueError("images must be float32 or uint8")

        return self._predict_correspondences_batched(source_image, target_image)

    def _predict_correspondences_batched(self, source_image, target_image):
        # TODO(synk): the image_scaler resize, self.forward (abstract correspondence
        # network) and unmap_predicted_flow / unmap_predicted_channels have no defined
        # reference implementation; return the normalized images so the
        # Pallas-implemented preprocessing can be verified end to end.
        return source_image, target_image


# -----------------------------------------------------------------------------
# Main: deterministic test of both normalization paths (+ ragged edge case).
# -----------------------------------------------------------------------------
if __name__ == "__main__":
    key = jax.random.PRNGKey(0)
    k1, k2, k3, k4, k5, k6 = jax.random.split(key, 6)

    model = UniFlowMatchModelsBaseJAX(encoder_data_norm_type="imagenet")

    mean = jnp.asarray(IMAGE_NORMALIZATION_DICT["imagenet"].mean, jnp.float32).reshape(1, 3, 1, 1)
    std = jnp.asarray(IMAGE_NORMALIZATION_DICT["imagenet"].std, jnp.float32).reshape(1, 3, 1, 1)

    # --- uint8 path (fast sublane-dense layout, cast fused in-kernel) ---------
    B, C, H, W = 2, 3, 16, 128            # H*W = 2048, multiple of 128
    src_u8 = jax.random.randint(k1, (B, C, H, W), 0, 256, dtype=jnp.int32).astype(jnp.uint8)
    tgt_u8 = jax.random.randint(k2, (B, C, H, W), 0, 256, dtype=jnp.int32).astype(jnp.uint8)
    ref_src = (src_u8.astype(jnp.float32) / 255.0 - mean) / std
    ref_tgt = (tgt_u8.astype(jnp.float32) / 255.0 - mean) / std

    norm_src, norm_tgt = model.predict_correspondences_batched(src_u8, tgt_u8)
    norm_src = jax.block_until_ready(norm_src)
    norm_tgt = jax.block_until_ready(norm_tgt)

    assert norm_src.shape == (B, C, H, W) and norm_src.dtype == jnp.float32
    assert jnp.allclose(norm_src, ref_src, atol=1e-5, rtol=1e-5), "uint8 path mismatch (src)"
    assert jnp.allclose(norm_tgt, ref_tgt, atol=1e-5, rtol=1e-5), "uint8 path mismatch (tgt)"

    # --- float32 re-normalization path (in-place aliased outputs) -------------
    src_f = jax.random.uniform(k3, (B, C, H, W), jnp.float32, -2.0, 2.0)
    tgt_f = jax.random.uniform(k4, (B, C, H, W), jnp.float32, -2.0, 2.0)

    prev = IMAGE_NORMALIZATION_DICT["half"]
    prev_mean = jnp.asarray(prev.mean, jnp.float32).reshape(1, 3, 1, 1)
    prev_std = jnp.asarray(prev.std, jnp.float32).reshape(1, 3, 1, 1)
    ref_rs = src_f * (prev_std / std) + (prev_mean - mean) / std
    ref_rt = tgt_f * (prev_std / std) + (prev_mean - mean) / std
    ref_rs = jax.block_until_ready(ref_rs)
    ref_rt = jax.block_until_ready(ref_rt)

    renorm_src, renorm_tgt = model.predict_correspondences_batched(
        src_f, tgt_f, data_norm_type="half"
    )
    renorm_src = jax.block_until_ready(renorm_src)
    renorm_tgt = jax.block_until_ready(renorm_tgt)

    assert jnp.allclose(renorm_src, ref_rs, atol=1e-5, rtol=1e-5), "float32 path mismatch (src)"
    assert jnp.allclose(renorm_tgt, ref_rt, atol=1e-5, rtol=1e-5), "float32 path mismatch (tgt)"

    # --- ragged spatial shape: H*W not a multiple of 128 exercises the
    #     lane-dense fallback path (full-extent block, no over-sized block) ----
    Br, Hr, Wr = 1, 14, 60
    src_r = jax.random.randint(k5, (Br, C, Hr, Wr), 0, 256, dtype=jnp.int32).astype(jnp.uint8)
    tgt_r = jax.random.randint(k6, (Br, C, Hr, Wr), 0, 256, dtype=jnp.int32).astype(jnp.uint8)
    ref_r_src = (src_r.astype(jnp.float32) / 255.0 - mean) / std
    ref_r_tgt = (tgt_r.astype(jnp.float32) / 255.0 - mean) / std

    nr_src, nr_tgt = model.predict_correspondences_batched(src_r, tgt_r)
    nr_src = jax.block_until_ready(nr_src)
    nr_tgt = jax.block_until_ready(nr_tgt)

    assert jnp.allclose(nr_src, ref_r_src, atol=1e-5, rtol=1e-5), "ragged-shape mismatch (src)"
    assert jnp.allclose(nr_tgt, ref_r_tgt, atol=1e-5, rtol=1e-5), "ragged-shape mismatch (tgt)"

    print("KERNEL_OK")
</pallas_src>

<mosaic_0001>
module attributes {stable_mosaic.version = 11 : i64} {
  func.func @kernel(%arg0: i32, %arg1: i32, %arg2: memref<1x3x16x128xi8, #tpu.memory_space<vmem>>, %arg3: memref<1x3x16x128xi8, #tpu.memory_space<vmem>>, %arg4: memref<1x3x16x128xf32, #tpu.memory_space<vmem>>, %arg5: memref<1x3x16x128xf32, #tpu.memory_space<vmem>>) attributes {dimension_semantics = [#tpu.dimension_semantics<parallel>, #tpu.dimension_semantics<parallel>], iteration_bounds = array<i64: 2, 1>, scalar_prefetch = 0 : i64, scratch_operands = 0 : i64, tpu.core_type = #tpu.core_type<tc>, window_params = [{transform_indices = @transform_0, window_bounds = array<i64: 1, 3, 16, 128>}, {transform_indices = @transform_1, window_bounds = array<i64: 1, 3, 16, 128>}, {transform_indices = @transform_2, window_bounds = array<i64: 1, 3, 16, 128>}, {transform_indices = @transform_3, window_bounds = array<i64: 1, 3, 16, 128>}]} {
    %c0 = arith.constant 0 : index
    %c0_0 = arith.constant 0 : index
    %c0_1 = arith.constant 0 : index
    %c0_2 = arith.constant 0 : index
    %0 = vector.load %arg2[%c0, %c0_0, %c0_1, %c0_2] : memref<1x3x16x128xi8, #tpu.memory_space<vmem>>, vector<1x1x16x128xi8>
    %1 = vector.shape_cast %0 : vector<1x1x16x128xi8> to vector<16x128xi8>
    %2 = arith.uitofp %1 : vector<16x128xi8> to vector<16x128xf32>
    %cst = arith.constant 0.0171247534 : f32
    %3 = vector.broadcast %cst : f32 to vector<16x128xf32>
    %4 = arith.mulf %2, %3 : vector<16x128xf32>
    %cst_3 = arith.constant -2.11790395 : f32
    %5 = vector.broadcast %cst_3 : f32 to vector<16x128xf32>
    %6 = arith.addf %4, %5 : vector<16x128xf32>
    %c0_4 = arith.constant 0 : index
    %c0_5 = arith.constant 0 : index
    %c0_6 = arith.constant 0 : index
    %c0_7 = arith.constant 0 : index
    %7 = vector.load %arg4[%c0_4, %c0_5, %c0_6, %c0_7] : memref<1x3x16x128xf32, #tpu.memory_space<vmem>>, vector<1x1x16x128xf32>
    %8 = vector.shape_cast %7 : vector<1x1x16x128xf32> to vector<16x128xf32>
    %9 = vector.shape_cast %6 : vector<16x128xf32> to vector<1x1x16x128xf32>
    tpu.vector_store %arg4[%c0_4, %c0_5, %c0_6, %c0_7], %9 {strides = array<i32>} : memref<1x3x16x128xf32, #tpu.memory_space<vmem>>, vector<1x1x16x128xf32>,
    %c0_8 = arith.constant 0 : index
    %c1 = arith.constant 1 : index
    %c0_9 = arith.constant 0 : index
    %c0_10 = arith.constant 0 : index
    %10 = vector.load %arg2[%c0_8, %c1, %c0_9, %c0_10] : memref<1x3x16x128xi8, #tpu.memory_space<vmem>>, vector<1x1x16x128xi8>
    %11 = vector.shape_cast %10 : vector<1x1x16x128xi8> to vector<16x128xi8>
    %12 = arith.uitofp %11 : vector<16x128xi8> to vector<16x128xf32>
    %cst_11 = arith.constant 0.0175070036 : f32
    %13 = vector.broadcast %cst_11 : f32 to vector<16x128xf32>
    %14 = arith.mulf %12, %13 : vector<16x128xf32>
    %cst_12 = arith.constant -2.03571439 : f32
    %15 = vector.broadcast %cst_12 : f32 to vector<16x128xf32>
    %16 = arith.addf %14, %15 : vector<16x128xf32>
    %c0_13 = arith.constant 0 : index
    %c1_14 = arith.constant 1 : index
    %c0_15 = arith.constant 0 : index
    %c0_16 = arith.constant 0 : index
    %17 = vector.load %arg4[%c0_13, %c1_14, %c0_15, %c0_16] : memref<1x3x16x128xf32, #tpu.memory_space<vmem>>, vector<1x1x16x128xf32>
    %18 = vector.shape_cast %17 : vector<1x1x16x128xf32> to vector<16x128xf32>
    %19 = vector.shape_cast %16 : vector<16x128xf32> to vector<1x1x16x128xf32>
    tpu.vector_store %arg4[%c0_13, %c1_14, %c0_15, %c0_16], %19 {strides = array<i32>} : memref<1x3x16x128xf32, #tpu.memory_space<vmem>>, vector<1x1x16x128xf32>,
    %c0_17 = arith.constant 0 : index
    %c2 = arith.constant 2 : index
    %c0_18 = arith.constant 0 : index
    %c0_19 = arith.constant 0 : index
    %20 = vector.load %arg2[%c0_17, %c2, %c0_18, %c0_19] : memref<1x3x16x128xi8, #tpu.memory_space<vmem>>, vector<1x1x16x128xi8>
    %21 = vector.shape_cast %20 : vector<1x1x16x128xi8> to vector<16x128xi8>
    %22 = arith.uitofp %21 : vector<16x128xi8> to vector<16x128xf32>
    %cst_20 = arith.constant 0.0174291935 : f32
    %23 = vector.broadcast %cst_20 : f32 to vector<16x128xf32>
    %24 = arith.mulf %22, %23 : vector<16x128xf32>
    %cst_21 = arith.constant -1.80444443 : f32
    %25 = vector.broadcast %cst_21 : f32 to vector<16x128xf32>
    %26 = arith.addf %24, %25 : vector<16x128xf32>
    %c0_22 = arith.constant 0 : index
    %c2_23 = arith.constant 2 : index
    %c0_24 = arith.constant 0 : index
    %c0_25 = arith.constant 0 : index
    %27 = vector.load %arg4[%c0_22, %c2_23, %c0_24, %c0_25] : memref<1x3x16x128xf32, #tpu.memory_space<vmem>>, vector<1x1x16x128xf32>
    %28 = vector.shape_cast %27 : vector<1x1x16x128xf32> to vector<16x128xf32>
    %29 = vector.shape_cast %26 : vector<16x128xf32> to vector<1x1x16x128xf32>
    tpu.vector_store %arg4[%c0_22, %c2_23, %c0_24, %c0_25], %29 {strides = array<i32>} : memref<1x3x16x128xf32, #tpu.memory_space<vmem>>, vector<1x1x16x128xf32>,
    %c0_26 = arith.constant 0 : index
    %c0_27 = arith.constant 0 : index
    %c0_28 = arith.constant 0 : index
    %c0_29 = arith.constant 0 : index
    %30 = vector.load %arg3[%c0_26, %c0_27, %c0_28, %c0_29] : memref<1x3x16x128xi8, #tpu.memory_space<vmem>>, vector<1x1x16x128xi8>
    %31 = vector.shape_cast %30 : vector<1x1x16x128xi8> to vector<16x128xi8>
    %32 = arith.uitofp %31 : vector<16x128xi8> to vector<16x128xf32>
    %cst_30 = arith.constant 0.0171247534 : f32
    %33 = vector.broadcast %cst_30 : f32 to vector<16x128xf32>
    %34 = arith.mulf %32, %33 : vector<16x128xf32>
    %cst_31 = arith.constant -2.11790395 : f32
    %35 = vector.broadcast %cst_31 : f32 to vector<16x128xf32>
    %36 = arith.addf %34, %35 : vector<16x128xf32>
    %c0_32 = arith.constant 0 : index
    %c0_33 = arith.constant 0 : index
    %c0_34 = arith.constant 0 : index
    %c0_35 = arith.constant 0 : index
    %37 = vector.load %arg5[%c0_32, %c0_33, %c0_34, %c0_35] : memref<1x3x16x128xf32, #tpu.memory_space<vmem>>, vector<1x1x16x128xf32>
    %38 = vector.shape_cast %37 : vector<1x1x16x128xf32> to vector<16x128xf32>
    %39 = vector.shape_cast %36 : vector<16x128xf32> to vector<1x1x16x128xf32>
    tpu.vector_store %arg5[%c0_32, %c0_33, %c0_34, %c0_35], %39 {strides = array<i32>} : memref<1x3x16x128xf32, #tpu.memory_space<vmem>>, vector<1x1x16x128xf32>,
    %c0_36 = arith.constant 0 : index
    %c1_37 = arith.constant 1 : index
    %c0_38 = arith.constant 0 : index
    %c0_39 = arith.constant 0 : index
    %40 = vector.load %arg3[%c0_36, %c1_37, %c0_38, %c0_39] : memref<1x3x16x128xi8, #tpu.memory_space<vmem>>, vector<1x1x16x128xi8>
    %41 = vector.shape_cast %40 : vector<1x1x16x128xi8> to vector<16x128xi8>
    %42 = arith.uitofp %41 : vector<16x128xi8> to vector<16x128xf32>
    %cst_40 = arith.constant 0.0175070036 : f32
    %43 = vector.broadcast %cst_40 : f32 to vector<16x128xf32>
    %44 = arith.mulf %42, %43 : vector<16x128xf32>
    %cst_41 = arith.constant -2.03571439 : f32
    %45 = vector.broadcast %cst_41 : f32 to vector<16x128xf32>
    %46 = arith.addf %44, %45 : vector<16x128xf32>
    %c0_42 = arith.constant 0 : index
    %c1_43 = arith.constant 1 : index
    %c0_44 = arith.constant 0 : index
    %c0_45 = arith.constant 0 : index
    %47 = vector.load %arg5[%c0_42, %c1_43, %c0_44, %c0_45] : memref<1x3x16x128xf32, #tpu.memory_space<vmem>>, vector<1x1x16x128xf32>
    %48 = vector.shape_cast %47 : vector<1x1x16x128xf32> to vector<16x128xf32>
    %49 = vector.shape_cast %46 : vector<16x128xf32> to vector<1x1x16x128xf32>
    tpu.vector_store %arg5[%c0_42, %c1_43, %c0_44, %c0_45], %49 {strides = array<i32>} : memref<1x3x16x128xf32, #tpu.memory_space<vmem>>, vector<1x1x16x128xf32>,
    %c0_46 = arith.constant 0 : index
    %c2_47 = arith.constant 2 : index
    %c0_48 = arith.constant 0 : index
    %c0_49 = arith.constant 0 : index
    %50 = vector.load %arg3[%c0_46, %c2_47, %c0_48, %c0_49] : memref<1x3x16x128xi8, #tpu.memory_space<vmem>>, vector<1x1x16x128xi8>
    %51 = vector.shape_cast %50 : vector<1x1x16x128xi8> to vector<16x128xi8>
    %52 = arith.uitofp %51 : vector<16x128xi8> to vector<16x128xf32>
    %cst_50 = arith.constant 0.0174291935 : f32
    %53 = vector.broadcast %cst_50 : f32 to vector<16x128xf32>
    %54 = arith.mulf %52, %53 : vector<16x128xf32>
    %cst_51 = arith.constant -1.80444443 : f32
    %55 = vector.broadcast %cst_51 : f32 to vector<16x128xf32>
    %56 = arith.addf %54, %55 : vector<16x128xf32>
    %c0_52 = arith.constant 0 : index
    %c2_53 = arith.constant 2 : index
    %c0_54 = arith.constant 0 : index
    %c0_55 = arith.constant 0 : index
    %57 = vector.load %arg5[%c0_52, %c2_53, %c0_54, %c0_55] : memref<1x3x16x128xf32, #tpu.memory_space<vmem>>, vector<1x1x16x128xf32>
    %58 = vector.shape_cast %57 : vector<1x1x16x128xf32> to vector<16x128xf32>
    %59 = vector.shape_cast %56 : vector<16x128xf32> to vector<1x1x16x128xf32>
    tpu.vector_store %arg5[%c0_52, %c2_53, %c0_54, %c0_55], %59 {strides = array<i32>} : memref<1x3x16x128xf32, #tpu.memory_space<vmem>>, vector<1x1x16x128xf32>,
    return
  }
  func.func @transform_0(%arg0: i32, %arg1: i32) -> (i32, i32, i32, i32) {
    %c0_i32 = arith.constant 0 : i32
    %c0_i32_0 = arith.constant 0 : i32
    %c0_i32_1 = arith.constant 0 : i32
    return %arg0, %c0_i32, %arg1, %c0_i32_0 : i32, i32, i32, i32
  }
  func.func @transform_1(%arg0: i32, %arg1: i32) -> (i32, i32, i32, i32) {
    %c0_i32 = arith.constant 0 : i32
    %c0_i32_0 = arith.constant 0 : i32
    %c0_i32_1 = arith.constant 0 : i32
    return %arg0, %c0_i32, %arg1, %c0_i32_0 : i32, i32, i32, i32
  }
  func.func @transform_2(%arg0: i32, %arg1: i32) -> (i32, i32, i32, i32) {
    %c0_i32 = arith.constant 0 : i32
    %c0_i32_0 = arith.constant 0 : i32
    %c0_i32_1 = arith.constant 0 : i32
    return %arg0, %c0_i32, %arg1, %c0_i32_0 : i32, i32, i32, i32
  }
  func.func @transform_3(%arg0: i32, %arg1: i32) -> (i32, i32, i32, i32) {
    %c0_i32 = arith.constant 0 : i32
    %c0_i32_0 = arith.constant 0 : i32
    %c0_i32_1 = arith.constant 0 : i32
    return %arg0, %c0_i32, %arg1, %c0_i32_0 : i32, i32, i32, i32
  }
}

</mosaic_0001>

<llo_original>
// kernel: tpu_custom_call.1
$region0: #{tpu_custom_call.1}
  #allocation0 [shape = 'u32[]', space=smem, size = 0x4, offset = 0x4, fixed_abs, tag = 'smem constant byte address 0x4 - core index']
  #allocation1 [shape = 'u32[144,128]{1,0:T(1,128)}', space=vmem, size = 0x12000, scoped, tag = 'internal scratch']
  %s0 = inlined_call_operand.hbm [shape: u8[2,3,16,128], index: 0, kind: input, shape index: {}]
  %s1 = inlined_call_operand.hbm [shape: u8[2,3,16,128], index: 1, kind: input, shape index: {}]
  %s2 = inlined_call_operand.hbm [shape: f32[2,3,16,128], index: 2, kind: output, shape index: {0}]
  %s3 = inlined_call_operand.hbm [shape: f32[2,3,16,128], index: 3, kind: output, shape index: {1}]
  %4 = xla_tuple %s2, %s3
  %s5 = sld [smem:[#allocation0]]
  $region57: #{tpu_custom_call.1} parent=0
    _
  %s7 = ssub.s32 1, %s5
  %s8 = scalar_select 0, %s7, %s5
  $region1: #{tpu_custom_call.1} parent=0
    #allocation2 [shape = 'u8[12288]{0}', space=vmem, size = 0x3000, scoped, tag = 'input window, operand 0']
    #allocation3 [shape = 's32[2]{0}', space=sflag, size = 0x8, scoped, tag = 'scoped memory for tpu_custom_call.1']
    #allocation4 [shape = 's32[2]{0}', space=sflag, size = 0x8, scoped, tag = 'scoped memory for tpu_custom_call.1']
    #allocation5 [shape = 'u8[12288]{0}', space=vmem, size = 0x3000, scoped, tag = 'input window, operand 1']
    #allocation6 [shape = 's32[2]{0}', space=sflag, size = 0x8, scoped, tag = 'scoped memory for tpu_custom_call.1']
    #allocation7 [shape = 'u8[49152]{0}', space=vmem, size = 0xc000, scoped, tag = 'output window, operand 0']
    #allocation8 [shape = 'u8[49152]{0}', space=vmem, size = 0xc000, scoped, tag = 'output window, operand 1']
    #allocation9 [shape = 's32[2]{0}', space=sflag, size = 0x8, scoped, tag = 'scoped memory for tpu_custom_call.1']
    %9 = vsyncpa [#allocation3], 0
    %s10 = scalar_lea.sflag [#allocation3], 1
    %11 = vsyncpa %s10, 0
    %12 = vsyncpa [#allocation6], 0
    %s13 = scalar_lea.sflag [#allocation6], 1
    %14 = vsyncpa %s13, 0
    %15 = vsyncpa [#allocation4], 0
    %s16 = scalar_lea.sflag [#allocation4], 1
    %17 = vsyncpa %s16, 0
    %18 = vsyncpa [#allocation9], 0
    %s19 = scalar_lea.sflag [#allocation9], 1
    %20 = vsyncpa %s19, 0
    loop: start=0, step=1, limit=4
    $region2: #{tpu_custom_call.1} parent=1 // loop_pre_header
      _
    $region3: #{tpu_custom_call.1} parent=1 // loop_header
      %s22 = sphi 0, %s26
      %p23 = scmp.ge.s32.totalorder %s22, 4
      %s29 = sphi 0, %s41
      %s30 = sphi 0, %s37
      %s31 = sphi 0, %s29
      %s32 = sphi 0, %s30
      %s33 = sphi 0, %s31
      %s34 = sphi 0, %s32
      %s46 = sphi 0, %s48
      %s49 = sphi 0, %s46
      %s50 = sphi 0, %s49
      %s66 = sphi 0, %s50
      %s74 = sphi 0, %s76
      %s77 = sphi 0, %s74
      %s78 = sphi 0, %s77
      %s94 = sphi 0, %s78
      %s102 = sphi 0, %s104
      %s105 = sphi 0, %s102
      %s106 = sphi 0, %s105
      %s122 = sphi 0, %s106
      %s130 = sphi 0, %s132
      %s133 = sphi 0, %s130
      %s134 = sphi 0, %s133
      %s150 = sphi 0, %s134
    $region4: #{tpu_custom_call.1} parent=1 // loop_header_branch
      %25 = sbr.rel (%p23) target = $region8
    $region5: #{tpu_custom_call.1} parent=1 // loop_body
      %s27 = ssub.s32 %s22, 1
      %s28 = ssub.s32 %s22, 2
      %s35 = sadd.s32 1, %s30
      %p36 = scmp.ge.s32.totalorder %s35, 1
      %s37 = scalar_select %p36, 0, %s35
      %s38 = sadd.s32 1, %s29
      %s39 = scalar_select %p36, %s38, %s29
      %p40 = scmp.ge.s32.totalorder %s39, 2
      %s41 = scalar_select %p40, 0, %s39
      %s42 = ssub.s32 %s29, %s41
      %s43 = ssub.s32 %s30, %s37
      %s44 = sor.u32 %s42, %s43
      %p45 = scmp.eq.s32.totalorder %s44, 0
      %s47 = sadd.s32 %s46, 1
      %s48 = scalar_select %p45, %s46, %s47
      %p51 = pneg %p45
      %p52 = scmp.eq.s32.totalorder %s22, 1
      %p53 = por %p51, %p52
      %p54 = scmp.ne.s32.totalorder %s46, %s49
      %p55 = scmp.eq.s32.totalorder %s22, 0
      %p56 = por %p54, %p55
      %p57 = scmp.ne.s32.totalorder %s46, %s49
      %p58 = scmp.eq.s32.totalorder %s27, 1
      %p59 = por %p57, %p58
      %p60 = scmp.ne.s32.totalorder %s49, %s50
      %p61 = scmp.eq.s32.totalorder %s27, 0
      %p62 = por %p60, %p61
      %p63 = scmp.ne.s32.totalorder %s49, %s50
      %p64 = scmp.eq.s32.totalorder %s28, 1
      %p65 = por %p63, %p64
      %p67 = scmp.ne.s32.totalorder %s50, %s66
      %p68 = scmp.eq.s32.totalorder %s28, 0
      %p69 = por %p67, %p68
      %s70 = ssub.s32 %s29, %s41
      %s71 = ssub.s32 %s30, %s37
      %s72 = sor.u32 %s70, %s71
      %p73 = scmp.eq.s32.totalorder %s72, 0
      %s75 = sadd.s32 %s74, 1
      %s76 = scalar_select %p73, %s74, %s75
      %p79 = pneg %p73
      %p80 = scmp.eq.s32.totalorder %s22, 1
      %p81 = por %p79, %p80
      %p82 = scmp.ne.s32.totalorder %s74, %s77
      %p83 = scmp.eq.s32.totalorder %s22, 0
      %p84 = por %p82, %p83
      %p85 = scmp.ne.s32.totalorder %s74, %s77
      %p86 = scmp.eq.s32.totalorder %s27, 1
      %p87 = por %p85, %p86
      %p88 = scmp.ne.s32.totalorder %s77, %s78
      %p89 = scmp.eq.s32.totalorder %s27, 0
      %p90 = por %p88, %p89
      %p91 = scmp.ne.s32.totalorder %s77, %s78
      %p92 = scmp.eq.s32.totalorder %s28, 1
      %p93 = por %p91, %p92
      %p95 = scmp.ne.s32.totalorder %s78, %s94
      %p96 = scmp.eq.s32.totalorder %s28, 0
      %p97 = por %p95, %p96
      %s98 = ssub.s32 %s29, %s41
      %s99 = ssub.s32 %s30, %s37
      %s100 = sor.u32 %s98, %s99
      %p101 = scmp.eq.s32.totalorder %s100, 0
      %s103 = sadd.s32 %s102, 1
      %s104 = scalar_select %p101, %s102, %s103
      %p107 = pneg %p101
      %p108 = scmp.eq.s32.totalorder %s22, 1
      %p109 = por %p107, %p108
      %p110 = scmp.ne.s32.totalorder %s102, %s105
      %p111 = scmp.eq.s32.totalorder %s22, 0
      %p112 = por %p110, %p111
      %p113 = scmp.ne.s32.totalorder %s102, %s105
      %p114 = scmp.eq.s32.totalorder %s27, 1
      %p115 = por %p113, %p114
      %p116 = scmp.ne.s32.totalorder %s105, %s106
      %p117 = scmp.eq.s32.totalorder %s27, 0
      %p118 = por %p116, %p117
      %p119 = scmp.ne.s32.totalorder %s105, %s106
      %p120 = scmp.eq.s32.totalorder %s28, 1
      %p121 = por %p119, %p120
      %p123 = scmp.ne.s32.totalorder %s106, %s122
      %p124 = scmp.eq.s32.totalorder %s28, 0
      %p125 = por %p123, %p124
      %s126 = ssub.s32 %s29, %s41
      %s127 = ssub.s32 %s30, %s37
      %s128 = sor.u32 %s126, %s127
      %p129 = scmp.eq.s32.totalorder %s128, 0
      %s131 = sadd.s32 %s130, 1
      %s132 = scalar_select %p129, %s130, %s131
      %p135 = pneg %p129
      %p136 = scmp.eq.s32.totalorder %s22, 1
      %p137 = por %p135, %p136
      %p138 = scmp.ne.s32.totalorder %s130, %s133
      %p139 = scmp.eq.s32.totalorder %s22, 0
      %p140 = por %p138, %p139
      %p141 = scmp.ne.s32.totalorder %s130, %s133
      %p142 = scmp.eq.s32.totalorder %s27, 1
      %p143 = por %p141, %p142
      %p144 = scmp.ne.s32.totalorder %s133, %s134
      %p145 = scmp.eq.s32.totalorder %s27, 0
      %p146 = por %p144, %p145
      %p147 = scmp.ne.s32.totalorder %s133, %s134
      %p148 = scmp.eq.s32.totalorder %s28, 1
      %p149 = por %p147, %p148
      %p151 = scmp.ne.s32.totalorder %s134, %s150
      %p152 = scmp.eq.s32.totalorder %s28, 0
      %p153 = por %p151, %p152
      %p154 = scmp.le.s32.totalorder 1, %s22
      %p155 = scmp.lt.s32.totalorder %s22, 3
      %p156 = pnand %p154, %p155
      %p157 = pneg %p156
      // Predicated region
      $region9: #{tpu_custom_call.1} parent=5 // pred_check
        _
      $region10: #{tpu_custom_call.1} parent=5 // pred_check_branch
        %159 = sbr.rel (%p156) target = $region12
      $region11: #{tpu_custom_call.1} parent=5 // pred_region
        %s160 = ssub.s32 %s22, 1
      $region12: #{tpu_custom_call.1} parent=5 // pred_fallthru
        _
      %p161 = scmp.lt.s32.totalorder %s22, 2
      // Predicated region
      $region13: #{tpu_custom_call.1} parent=5 // pred_check
        %p162 = pneg %p161
      $region14: #{tpu_custom_call.1} parent=5 // pred_check_branch
        %164 = sbr.rel (%p162) target = $region16
      $region15: #{tpu_custom_call.1} parent=5 // pred_region
        // Predicated region
        $region17: #{tpu_custom_call.1} parent=15 // pred_check
          %p165 = pneg %p56
        $region18: #{tpu_custom_call.1} parent=15 // pred_check_branch
          %167 = sbr.rel (%p165) target = $region20
        $region19: #{tpu_custom_call.1} parent=15 // pred_region
          %s168 = sand.u32 %s46, 1
          %s169 = scalar_lea.sflag [#allocation3], %s168
          %s170 = sand.u32 %s46, 1
          %s171 = smul.addr %s170, 12
          %s172 = scalar_lea.vmem [#allocation2], %s171
          %s173 = smul.u32 2, %s30
          %s175 = ssub.s32 192, 192
          %176 = vsyncadd %s169, %s175
          %s177 = smul.addr %s29, 6
          %s178 = sadd.s32 %s173, %s177
          %s179 = smul.addr %s178, 32
          %s180 = scalar_lea.hbm %s0, %s179
          %s181 = sshll.u32 %s172, 4
          %s182 = int_to_ptr.vmem [resolvable:$true] %s181
          %187 = dma.hbm_to_vmem [thread:$0]  %s180, 192, %s182, %s169, 32, 32, 2
        $region20: #{tpu_custom_call.1} parent=15 // pred_fallthru
          _
        // Predicated region
        $region21: #{tpu_custom_call.1} parent=15 // pred_check
          %p188 = pneg %p84
        $region22: #{tpu_custom_call.1} parent=15 // pred_check_branch
          %190 = sbr.rel (%p188) target = $region24
        $region23: #{tpu_custom_call.1} parent=15 // pred_region
          %s191 = sand.u32 %s74, 1
          %s192 = scalar_lea.sflag [#allocation6], %s191
          %s193 = sand.u32 %s74, 1
          %s194 = smul.addr %s193, 12
          %s195 = scalar_lea.vmem [#allocation5], %s194
          %s196 = smul.u32 2, %s30
          %s198 = ssub.s32 192, 192
          %199 = vsyncadd %s192, %s198
          %s200 = smul.addr %s29, 6
          %s201 = sadd.s32 %s196, %s200
          %s202 = smul.addr %s201, 32
          %s203 = scalar_lea.hbm %s1, %s202
          %s204 = sshll.u32 %s195, 4
          %s205 = int_to_ptr.vmem [resolvable:$true] %s204
          %210 = dma.hbm_to_vmem [thread:$0]  %s203, 192, %s205, %s192, 32, 32, 2
        $region24: #{tpu_custom_call.1} parent=15 // pred_fallthru
          _
      $region16: #{tpu_custom_call.1} parent=5 // pred_fallthru
        _
      %p211 = scmp.le.s32.totalorder 1, %s22
      %p212 = scmp.lt.s32.totalorder %s22, 3
      %p213 = pnand %p211, %p212
      %p214 = pneg %p213
      // Predicated region
      $region25: #{tpu_custom_call.1} parent=5 // pred_check
        _
      $region26: #{tpu_custom_call.1} parent=5 // pred_check_branch
        %216 = sbr.rel (%p213) target = $region28
      $region27: #{tpu_custom_call.1} parent=5 // pred_region
        %s217 = ssub.s32 %s22, 1
        %s218 = sand.u32 %s49, 1
        %s219 = scalar_lea.sflag [#allocation3], %s218
        %s220 = sand.u32 %s49, 1
        %s221 = smul.addr %s220, 12
        %s222 = scalar_lea.vmem [#allocation2], %s221
        // Predicated region
        $region29: #{tpu_custom_call.1} parent=27 // pred_check
          %p223 = pneg %p62
        $region30: #{tpu_custom_call.1} parent=27 // pred_check_branch
          %225 = sbr.rel (%p223) target = $region32
        $region31: #{tpu_custom_call.1} parent=27 // pred_region
          %226 = dma.done %s219, 192
        $region32: #{tpu_custom_call.1} parent=27 // pred_fallthru
          _
        %s227 = sand.u32 %s77, 1
        %s228 = scalar_lea.sflag [#allocation6], %s227
        %s229 = sand.u32 %s77, 1
        %s230 = smul.addr %s229, 12
        %s231 = scalar_lea.vmem [#allocation5], %s230
        // Predicated region
        $region33: #{tpu_custom_call.1} parent=27 // pred_check
          %p232 = pneg %p90
        $region34: #{tpu_custom_call.1} parent=27 // pred_check_branch
          %234 = sbr.rel (%p232) target = $region36
        $region35: #{tpu_custom_call.1} parent=27 // pred_region
          %235 = dma.done %s228, 192
        $region36: #{tpu_custom_call.1} parent=27 // pred_fallthru
          _
        %s236 = sand.u32 %s49, 1
        %s237 = scalar_lea.sflag [#allocation3], %s236
        %s238 = sand.u32 %s49, 1
        %s239 = smul.addr %s238, 12
        %s240 = scalar_lea.vmem [#allocation2], %s239
        %p241 = pneg %p62
        %p242 = pneg %p59
        %s243 = sand.u32 %s77, 1
        %s244 = scalar_lea.sflag [#allocation6], %s243
        %s245 = sand.u32 %s77, 1
        %s246 = smul.addr %s245, 12
        %s247 = scalar_lea.vmem [#allocation5], %s246
        %p248 = pneg %p90
        %p249 = pneg %p87
        %p250 = pneg %p118
        %p251 = pneg %p115
        %s252 = sand.u32 %s105, 1
        %s253 = scalar_lea.sflag [#allocation4], %s252
        %s254 = sand.u32 %s105, 1
        %s255 = smul.addr %s254, 48
        %s256 = scalar_lea.vmem [#allocation7], %s255
        %p257 = pneg %p146
        %p258 = pneg %p143
        %s259 = sand.u32 %s133, 1
        %s260 = scalar_lea.sflag [#allocation9], %s259
        %s261 = sand.u32 %s133, 1
        %s262 = smul.addr %s261, 48
        %s263 = scalar_lea.vmem [#allocation8], %s262
        %s264 = smul.u32 2, %s32
        %s265 = smul.u32 2, %s32
        %s266 = smul.u32 2, %s32
        %s267 = smul.u32 2, %s32
        %v268 = vld [vmem:[%s222] sm:$0x3]
        %v269 = vld [vmem:[%s222 + $0x2] sm:$0x3]
        %v270 = vunpack.c.0.s8 %v268
        %v271 = vunpack.c.0.s8 %v269
        %v272 = vand.u32 %v270, 255
        %v273 = vand.u32 %v271, 255
        %v274 = vcvt.s32.f32 %v272
        %v275 = vcvt.s32.f32 %v273
        %v276 = vmul.f32 %v274, 0.017124753
        %v277 = vmul.f32 %v275, 0.017124753
        %v278 = vadd.f32 %v276, -2.117904
        %v279 = vadd.f32 %v277, -2.117904
        %280 = vst [vmem:[%s256] sm:$0xff] %v278
        %281 = vst [vmem:[%s256 + $0x8] sm:$0xff] %v279
        %s282 = scalar_lea.vmem %s222, 4 [#allocation2]
        %v283 = vld [vmem:[%s282] sm:$0x3]
        %v284 = vld [vmem:[%s282 + $0x2] sm:$0x3]
        %v285 = vunpack.c.0.s8 %v283
        %v286 = vunpack.c.0.s8 %v284
        %v287 = vand.u32 %v285, 255
        %v288 = vand.u32 %v286, 255
        %v289 = vcvt.s32.f32 %v287
        %v290 = vcvt.s32.f32 %v288
        %v291 = vmul.f32 %v289, 0.017507004
        %v292 = vmul.f32 %v290, 0.017507004
        %v293 = vadd.f32 %v291, -2.0357144
        %v294 = vadd.f32 %v292, -2.0357144
        %s295 = scalar_lea.vmem %s256, 16 [#allocation7]
        %296 = vst [vmem:[%s295] sm:$0xff] %v293
        %297 = vst [vmem:[%s295 + $0x8] sm:$0xff] %v294
        %s298 = scalar_lea.vmem %s222, 8 [#allocation2]
        %v299 = vld [vmem:[%s298] sm:$0x3]
        %v300 = vld [vmem:[%s298 + $0x2] sm:$0x3]
        %v301 = vunpack.c.0.s8 %v299
        %v302 = vunpack.c.0.s8 %v300
        %v303 = vand.u32 %v301, 255
        %v304 = vand.u32 %v302, 255
        %v305 = vcvt.s32.f32 %v303
        %v306 = vcvt.s32.f32 %v304
        %v307 = vmul.f32 %v305, 0.017429193
        %v308 = vmul.f32 %v306, 0.017429193
        %v309 = vadd.f32 %v307, -1.8044444
        %v310 = vadd.f32 %v308, -1.8044444
        %s311 = scalar_lea.vmem %s256, 32 [#allocation7]
        %312 = vst [vmem:[%s311] sm:$0xff] %v309
        %313 = vst [vmem:[%s311 + $0x8] sm:$0xff] %v310
        %v314 = vld [vmem:[%s231] sm:$0x3]
        %v315 = vld [vmem:[%s231 + $0x2] sm:$0x3]
        %v316 = vunpack.c.0.s8 %v314
        %v317 = vunpack.c.0.s8 %v315
        %v318 = vand.u32 %v316, 255
        %v319 = vand.u32 %v317, 255
        %v320 = vcvt.s32.f32 %v318
        %v321 = vcvt.s32.f32 %v319
        %v322 = vmul.f32 %v320, 0.017124753
        %v323 = vmul.f32 %v321, 0.017124753
        %v324 = vadd.f32 %v322, -2.117904
        %v325 = vadd.f32 %v323, -2.117904
        %326 = vst [vmem:[%s263] sm:$0xff] %v324
        %327 = vst [vmem:[%s263 + $0x8] sm:$0xff] %v325
        %s328 = scalar_lea.vmem %s231, 4 [#allocation5]
        %v329 = vld [vmem:[%s328] sm:$0x3]
        %v330 = vld [vmem:[%s328 + $0x2] sm:$0x3]
        %v331 = vunpack.c.0.s8 %v329
        %v332 = vunpack.c.0.s8 %v330
        %v333 = vand.u32 %v331, 255
        %v334 = vand.u32 %v332, 255
        %v335 = vcvt.s32.f32 %v333
        %v336 = vcvt.s32.f32 %v334
        %v337 = vmul.f32 %v335, 0.017507004
        %v338 = vmul.f32 %v336, 0.017507004
        %v339 = vadd.f32 %v337, -2.0357144
        %v340 = vadd.f32 %v338, -2.0357144
        %s341 = scalar_lea.vmem %s263, 16 [#allocation8]
        %342 = vst [vmem:[%s341] sm:$0xff] %v339
        %343 = vst [vmem:[%s341 + $0x8] sm:$0xff] %v340
        %s344 = scalar_lea.vmem %s231, 8 [#allocation5]
        %v345 = vld [vmem:[%s344] sm:$0x3]
        %v346 = vld [vmem:[%s344 + $0x2] sm:$0x3]
        %v347 = vunpack.c.0.s8 %v345
        %v348 = vunpack.c.0.s8 %v346
        %v349 = vand.u32 %v347, 255
        %v350 = vand.u32 %v348, 255
        %v351 = vcvt.s32.f32 %v349
        %v352 = vcvt.s32.f32 %v350
        %v353 = vmul.f32 %v351, 0.017429193
        %v354 = vmul.f32 %v352, 0.017429193
        %v355 = vadd.f32 %v353, -1.8044444
        %v356 = vadd.f32 %v354, -1.8044444
        %s357 = scalar_lea.vmem %s263, 32 [#allocation8]
        %358 = vst [vmem:[%s357] sm:$0xff] %v355
        %359 = vst [vmem:[%s357 + $0x8] sm:$0xff] %v356
        %s360 = sand.u32 %s105, 1
        %s361 = scalar_lea.sflag [#allocation4], %s360
        %s362 = sand.u32 %s105, 1
        %s363 = smul.addr %s362, 48
        %s364 = scalar_lea.vmem [#allocation7], %s363
        %s365 = sand.u32 %s133, 1
        %s366 = scalar_lea.sflag [#allocation9], %s365
        %s367 = sand.u32 %s133, 1
        %s368 = smul.addr %s367, 48
        %s369 = scalar_lea.vmem [#allocation8], %s368
        // Predicated region
        $region37: #{tpu_custom_call.1} parent=27 // pred_check
          %p370 = pneg %p115
        $region38: #{tpu_custom_call.1} parent=27 // pred_check_branch
          %372 = sbr.rel (%p370) target = $region40
        $region39: #{tpu_custom_call.1} parent=27 // pred_region
          %s373 = smul.u32 2, %s32
          %s375 = ssub.s32 768, 768
          %376 = vsyncadd %s361, %s375
          %s377 = smul.addr %s31, 6
          %s378 = sadd.s32 %s373, %s377
          %s379 = smul.addr %s378, 128
          %s380 = scalar_lea.hbm %s2, %s379
          %s381 = sshll.u32 %s364, 4
          %s382 = int_to_ptr.vmem [resolvable:$true] %s381
          %387 = dma.vmem_to_hbm [thread:$0]  %s382, 768, %s380, %s361, 128, 128, 8
        $region40: #{tpu_custom_call.1} parent=27 // pred_fallthru
          _
        // Predicated region
        $region41: #{tpu_custom_call.1} parent=27 // pred_check
          %p388 = pneg %p143
        $region42: #{tpu_custom_call.1} parent=27 // pred_check_branch
          %390 = sbr.rel (%p388) target = $region44
        $region43: #{tpu_custom_call.1} parent=27 // pred_region
          %s391 = smul.u32 2, %s32
          %s393 = ssub.s32 768, 768
          %394 = vsyncadd %s366, %s393
          %s395 = smul.addr %s31, 6
          %s396 = sadd.s32 %s391, %s395
          %s397 = smul.addr %s396, 128
          %s398 = scalar_lea.hbm %s3, %s397
          %s399 = sshll.u32 %s369, 4
          %s400 = int_to_ptr.vmem [resolvable:$true] %s399
          %405 = dma.vmem_to_hbm [thread:$0]  %s400, 768, %s398, %s366, 128, 128, 8
        $region44: #{tpu_custom_call.1} parent=27 // pred_fallthru
          _
      $region28: #{tpu_custom_call.1} parent=5 // pred_fallthru
        _
      %p406 = scmp.le.s32.totalorder 2, %s22
      // Predicated region
      $region45: #{tpu_custom_call.1} parent=5 // pred_check
        %p407 = pneg %p406
      $region46: #{tpu_custom_call.1} parent=5 // pred_check_branch
        %409 = sbr.rel (%p407) target = $region48
      $region47: #{tpu_custom_call.1} parent=5 // pred_region
        %s410 = ssub.s32 %s22, 2
        // Predicated region
        $region49: #{tpu_custom_call.1} parent=47 // pred_check
          %p411 = pneg %p121
        $region50: #{tpu_custom_call.1} parent=47 // pred_check_branch
          %413 = sbr.rel (%p411) target = $region52
        $region51: #{tpu_custom_call.1} parent=47 // pred_region
          %s414 = sand.u32 %s106, 1
          %s415 = scalar_lea.sflag [#allocation4], %s414
          %s416 = sand.u32 %s106, 1
          %s417 = smul.addr %s416, 48
          %s418 = scalar_lea.vmem [#allocation7], %s417
          %419 = dma.done %s415, 768
        $region52: #{tpu_custom_call.1} parent=47 // pred_fallthru
          _
        // Predicated region
        $region53: #{tpu_custom_call.1} parent=47 // pred_check
          %p420 = pneg %p149
        $region54: #{tpu_custom_call.1} parent=47 // pred_check_branch
          %422 = sbr.rel (%p420) target = $region56
        $region55: #{tpu_custom_call.1} parent=47 // pred_region
          %s423 = sand.u32 %s134, 1
          %s424 = scalar_lea.sflag [#allocation9], %s423
          %s425 = sand.u32 %s134, 1
          %s426 = smul.addr %s425, 48
          %s427 = scalar_lea.vmem [#allocation8], %s426
          %428 = dma.done %s424, 768
        $region56: #{tpu_custom_call.1} parent=47 // pred_fallthru
          _
      $region48: #{tpu_custom_call.1} parent=5 // pred_fallthru
        _
    $region6: #{tpu_custom_call.1} parent=1 // loop_footer
      %s26 = sadd.s32 1, %s22
    $region7: #{tpu_custom_call.1} parent=1 // loop_footer_branch
      %21 = sbr.rel target = $region3
    $region8: #{tpu_custom_call.1} parent=1 // loop_exit
      _
    %429 = vsyncpa [#allocation3], 1
    %s430 = scalar_lea.sflag [#allocation3], 1
    %431 = vsyncpa %s430, 1
    %432 = vsyncpa [#allocation6], 1
    %s433 = scalar_lea.sflag [#allocation6], 1
    %434 = vsyncpa %s433, 1
    %435 = vsyncpa [#allocation4], 1
    %s436 = scalar_lea.sflag [#allocation4], 1
    %437 = vsyncpa %s436, 1
    %438 = vsyncpa [#allocation9], 1
    %s439 = scalar_lea.sflag [#allocation9], 1
    %440 = vsyncpa %s439, 1

</llo_original>
